<compile_context>
chip_gen: v6e
topology: v6e:2x2x1
jax: 0.10.0
libtpu: 0.0.40
codegen_flags: <defaults>
</compile_context>

<pallas_src>
import numpy as np
import jax
import jax.numpy as jnp
from jax.experimental import pallas as pl
from jax.experimental.pallas import tpu as pltpu

KERNEL_SIZE = 3  # module default (kernel_size=3, stride=1, padding=1)


def _round_up(x, m):
    return (x + m - 1) // m * m


def _vmem_limit_bytes():
    # Explicit VMEM budget (defaults are only 16/32 MiB scoped):
    # ~108 MiB on v5e/v6e (128 MiB physical), ~54 MiB on v7x (64 MiB physical).
    try:
        return int(pltpu.get_tpu_info().vmem_capacity_bytes * 0.85)
    except Exception:
        return 64 * 1024 * 1024


# ---------------------------------------------------------------------------
# Fused kernel: all conv layers + ReLU (+ optional shortcut / concat_hidden)
# + masked max readout, one protein (batch element) per grid step.
# ---------------------------------------------------------------------------
def _make_fused_kernel(n_layers, layer_dims, L_orig, short_cut, concat_hidden,
                       compute_dtype):
    def kernel(len_ref, x_ref, *args):
        # len_ref   : SMEM (B,) int32 (scalar-prefetched num_residues)
        # x_ref     : (1, Lp, Cin) padded residue features (compute_dtype)
        # args      : w_0..w_{n-1} (K, Cin_i, Cout_i) compute_dtype,
        #             b_0..b_{n-1} (1, Cout_i) f32,
        #             hid_ref (1, Lp, D_out), graph_ref (1, 1, D_out)
        w_refs = args[:n_layers]
        b_refs = args[n_layers:2 * n_layers]
        hid_ref = args[2 * n_layers]
        graph_ref = args[2 * n_layers + 1]

        n_valid = len_ref[pl.program_id(0)]
        h = x_ref[0]                                     # (Lp, C0)
        Lp = h.shape[0]

        # Row-index masks built once (hoisted off the per-layer VALU path) and
        # broadcast along lanes inside jnp.where.
        rows = jax.lax.broadcasted_iota(jnp.int32, (Lp, 1), 0)
        mask_prev = rows >= 1                # conv zero-padding on the left
        mask_next = rows < (L_orig - 1)      # conv zero-padding on the right;
                                             # also zeroes the L-alignment pad rows
        mask_valid = rows < n_valid          # per-protein readout mask

        off = 0
        for i in range(n_layers):
            c_out = layer_dims[i]
            hc = h.astype(compute_dtype)                 # ONE cast per layer
            zero = jnp.zeros((), hc.dtype)
            # Shifted copies with zeroed halo rows (conv padding=1), built with
            # XLU rotations in VMEM instead of a padded HBM copy per layer.
            h_prev = jnp.where(mask_prev, pltpu.roll(hc, 1, axis=0), zero)
            h_next = jnp.where(mask_next, pltpu.roll(hc, Lp - 1, axis=0), zero)

            w = w_refs[i]
            # Per-tap MXU matmuls with f32 accumulation; accumulator is
            # initialized by the first dot (no zeros+add).
            acc = jnp.dot(h_prev, w[0], preferred_element_type=jnp.float32)
            acc = acc + jnp.dot(hc, w[1], preferred_element_type=jnp.float32)
            acc = acc + jnp.dot(h_next, w[2], preferred_element_type=jnp.float32)
            out = jnp.maximum(acc + b_refs[i][...], 0.0)     # f32 bias + ReLU
            if short_cut and out.shape == h.shape:
                out = out + h.astype(jnp.float32)

            # Incremental writeback: bounds live VMEM to one layer's activation
            # even for concat_hidden, and fuses the masked max readout.
            if concat_hidden or i == n_layers - 1:
                # Masking with 0.0 is exact post-ReLU (values >= 0) and safe for
                # empty proteins (n_valid == 0).
                g = jnp.max(jnp.where(mask_valid, out, 0.0),
                            axis=0, keepdims=True)
                if concat_hidden and n_layers > 1:
                    hid_ref[0, :, off:off + c_out] = out.astype(hid_ref.dtype)
                    graph_ref[0, :, off:off + c_out] = g.astype(graph_ref.dtype)
                    off += c_out
                else:
                    hid_ref[0] = out.astype(hid_ref.dtype)
                    graph_ref[0] = g.astype(graph_ref.dtype)
            h = out

    return kernel


# ---------------------------------------------------------------------------
# Full forward (matches ProteinConvolutionalNetwork.forward with defaults:
# activation='relu', readout='max'; short_cut / concat_hidden supported).
# ---------------------------------------------------------------------------
def protein_cnn_forward(padded_input, num_residues, weights, biases,
                        short_cut=False, concat_hidden=False,
                        compute_dtype=jnp.bfloat16, hidden_dtype=None):
    """padded_input: [B, L, Cin]; weights[i]: (Cout, Cin, K) PyTorch Conv1d layout.

    compute_dtype: MXU input dtype.  bf16 (default) ~doubles MXU throughput and
      halves weight/activation DMA on v6e/v7x; accumulation and the elementwise
      epilogue stay f32 (also the right structure for v5e).  Use jnp.float32 for
      bit-faithful reference numerics.
    hidden_dtype: dtype of the (B, L, D_out) residue-feature writeback (defaults
      to compute_dtype); graph_feature is always f32.
    """
    B, L, Cin = padded_input.shape
    n_layers = len(weights)
    assert n_layers >= 1
    assert all(int(w.shape[2]) == KERNEL_SIZE for w in weights)
    out_dims = [int(w.shape[0]) for w in weights]
    D_out = sum(out_dims) if concat_hidden else out_dims[-1]
    if hidden_dtype is None:
        hidden_dtype = compute_dtype

    # Pad the sequence axis to a multiple of 16 (clean f32/bf16 sublane packing).
    # Padded rows are zeroed out of every conv by the in-kernel masks.
    Lp = max(_round_up(L, 16), 16)
    x = jnp.asarray(padded_input).astype(compute_dtype)
    if Lp != L:
        x = jnp.pad(x, ((0, 0), (0, Lp - L), (0, 0)))

    # Conv1d (Cout, Cin, K) -> (K, Cin, Cout): tap k=0 -> x[t-1], 1 -> x[t], 2 -> x[t+1].
    w_list = [jnp.transpose(jnp.asarray(w), (2, 1, 0)).astype(compute_dtype)
              for w in weights]
    b_list = [jnp.asarray(b, jnp.float32).reshape(1, -1) for b in biases]
    lengths = jnp.asarray(num_residues, jnp.int32)

    in_specs = [pl.BlockSpec((1, Lp, Cin), lambda b, lens: (b, 0, 0))]
    for w in w_list:                       # grid-constant: DMA'd only once
        in_specs.append(pl.BlockSpec(w.shape, lambda b, lens: (0, 0, 0)))
    for bb in b_list:
        in_specs.append(pl.BlockSpec(bb.shape, lambda b, lens: (0, 0)))

    out_shape = (jax.ShapeDtypeStruct((B, Lp, D_out), hidden_dtype),
                 jax.ShapeDtypeStruct((B, 1, D_out), jnp.float32))
    out_specs = (pl.BlockSpec((1, Lp, D_out), lambda b, lens: (b, 0, 0)),
                 pl.BlockSpec((1, 1, D_out), lambda b, lens: (b, 0, 0)))

    kernel = _make_fused_kernel(n_layers, out_dims, L, short_cut,
                                concat_hidden, compute_dtype)
    hidden, graph = pl.pallas_call(
        kernel,
        out_shape=out_shape,
        grid_spec=pltpu.PrefetchScalarGridSpec(
            num_scalar_prefetch=1,
            grid=(B,),
            in_specs=in_specs,
            out_specs=out_specs,
        ),
        compiler_params=pltpu.CompilerParams(
            dimension_semantics=("parallel",),        # shards B across v7x's 2 TCs
            vmem_limit_bytes=_vmem_limit_bytes()),
    )(lengths, x, *w_list, *b_list)

    graph_feature = graph.reshape(B, D_out)

    # padded_to_variadic: one gather of all valid residues (output size is
    # data-dependent, so lengths must be concrete here -- inherent to the op).
    lens_np = [int(n) for n in np.asarray(num_residues)]
    if sum(lens_np) > 0:
        idx = np.concatenate(
            [i * Lp + np.arange(n, dtype=np.int32) for i, n in enumerate(lens_np)])
    else:
        idx = np.zeros((0,), np.int32)
    residue_feature = jnp.take(hidden.reshape(B * Lp, D_out),
                               jnp.asarray(idx, jnp.int32), axis=0)
    return {"graph_feature": graph_feature,
            "residue_feature": residue_feature.astype(jnp.float32)}


# ---------------------------------------------------------------------------
if __name__ == "__main__":
    key = jax.random.PRNGKey(0)

    B = 2
    L_max = 14                      # not a multiple of 8/16: exercises L padding
    input_dim = 8
    hidden_dims = [32, 32]
    num_residues = [11, 14]
    padding_id = input_dim - 1      # as in the module's __init__

    keys = jax.random.split(key, 1 + 2 * len(hidden_dims))
    k_feat, k_params = keys[0], keys[1:]

    # Variadic residue features -> variadic_to_padded(value=padding_id)
    feat = jax.random.normal(k_feat, (sum(num_residues), input_dim), jnp.float32)
    padded = jnp.full((B, L_max, input_dim), float(padding_id), jnp.float32)
    off = 0
    for i, n in enumerate(num_residues):
        padded = padded.at[i, :n].set(feat[off:off + n])
        off += n

    # Deterministic Conv1d parameter init (PyTorch default uniform bound)
    dims = [input_dim] + list(hidden_dims)
    weights, biases = [], []
    for i in range(len(dims) - 1):
        cin, cout = dims[i], dims[i + 1]
        bound = 1.0 / np.sqrt(cin * KERNEL_SIZE)
        kw, kb = k_params[2 * i], k_params[2 * i + 1]
        weights.append(jax.random.uniform(
            kw, (cout, cin, KERNEL_SIZE), jnp.float32, -bound, bound))
        biases.append(jax.random.uniform(kb, (cout,), jnp.float32, -bound, bound))

    # ------------------ pure-JAX reference (XLA conv) ------------------
    def reference(short_cut, concat_hidden):
        hiddens, layer_input = [], padded
        for w, b in zip(weights, biases):
            hid = jax.lax.conv_general_dilated(
                layer_input, jnp.transpose(w, (2, 1, 0)),
                window_strides=(1,), padding=[(1, 1)],
                dimension_numbers=("NWC", "WIO", "NWC"),
                precision=jax.lax.Precision.HIGHEST)
            hid = jnp.maximum(hid + b[None, None, :], 0.0)
            if short_cut and hid.shape == layer_input.shape:
                hid = hid + layer_input
            hiddens.append(hid)
            layer_input = hid
        hidden = jnp.concatenate(hiddens, -1) if concat_hidden else hiddens[-1]
        res = jnp.concatenate(
            [hidden[i, :n] for i, n in enumerate(num_residues)], axis=0)
        g = jnp.stack(
            [jnp.max(hidden[i, :n], axis=0) for i, n in enumerate(num_residues)], 0)
        return np.asarray(res), np.asarray(g)

    def check(out, ref, rtol, atol):
        rf = jax.block_until_ready(out["residue_feature"])
        gf = jax.block_until_ready(out["graph_feature"])
        np.testing.assert_allclose(np.asarray(rf), ref[0], rtol=rtol, atol=atol)
        np.testing.assert_allclose(np.asarray(gf), ref[1], rtol=rtol, atol=atol)

    # ---------------- f32 path: bit-faithful layout / masking check ----------------
    out_f32 = protein_cnn_forward(padded, num_residues, weights, biases,
                                  compute_dtype=jnp.float32)
    assert out_f32["graph_feature"].shape == (B, hidden_dims[-1])
    assert out_f32["residue_feature"].shape == (sum(num_residues), hidden_dims[-1])
    check(out_f32, reference(False, False), 1e-5, 1e-5)

    # ------- f32 path with short_cut + concat_hidden (incremental writeback) -------
    out_cc = protein_cnn_forward(padded, num_residues, weights, biases,
                                 short_cut=True, concat_hidden=True,
                                 compute_dtype=jnp.float32)
    assert out_cc["graph_feature"].shape == (B, sum(hidden_dims))
    check(out_cc, reference(True, True), 1e-5, 1e-5)

    # --------- default bf16 compute path (v6e/v7x MXU, f32 accumulation) ---------
    out_bf16 = protein_cnn_forward(padded, num_residues, weights, biases)
    check(out_bf16, reference(False, False), 1e-1, 1e-1)

    print("KERNEL_OK")
</pallas_src>

<mosaic_0001>
module attributes {stable_mosaic.version = 11 : i64} {
  func.func @kernel(%arg0: i32, %arg1: memref<2xi32, #tpu.memory_space<smem>>, %arg2: memref<1x16x8xf32, #tpu.memory_space<vmem>>, %arg3: memref<3x8x32xf32, #tpu.memory_space<vmem>>, %arg4: memref<3x32x32xf32, #tpu.memory_space<vmem>>, %arg5: memref<1x32xf32, #tpu.memory_space<vmem>>, %arg6: memref<1x32xf32, #tpu.memory_space<vmem>>, %arg7: memref<1x16x32xf32, #tpu.memory_space<vmem>>, %arg8: memref<1x1x32xf32, #tpu.memory_space<vmem>>) attributes {dimension_semantics = [#tpu.dimension_semantics<parallel>], iteration_bounds = array<i64: 2>, scalar_prefetch = 1 : i64, scratch_operands = 0 : i64, tpu.core_type = #tpu.core_type<tc>, window_params = [{transform_indices = @transform_0, window_bounds = array<i64: 1, 16, 8>}, {pipeline_mode = #tpu.pipeline_mode<synchronous>, transform_indices = @transform_1, window_bounds = array<i64: 3, 8, 32>}, {pipeline_mode = #tpu.pipeline_mode<synchronous>, transform_indices = @transform_2, window_bounds = array<i64: 3, 32, 32>}, {pipeline_mode = #tpu.pipeline_mode<synchronous>, transform_indices = @transform_3, window_bounds = array<i64: 1, 32>}, {pipeline_mode = #tpu.pipeline_mode<synchronous>, transform_indices = @transform_4, window_bounds = array<i64: 1, 32>}, {transform_indices = @transform_5, window_bounds = array<i64: 1, 16, 32>}, {transform_indices = @transform_6, window_bounds = array<i64: 1, 1, 32>}]} {
    %0 = arith.index_cast %arg0 : i32 to index
    %1 = memref.load %arg1[%0] : memref<2xi32, #tpu.memory_space<smem>>
    %c0 = arith.constant 0 : index
    %c0_0 = arith.constant 0 : index
    %c0_1 = arith.constant 0 : index
    %2 = vector.load %arg2[%c0, %c0_0, %c0_1] : memref<1x16x8xf32, #tpu.memory_space<vmem>>, vector<1x16x8xf32>
    %3 = vector.shape_cast %2 : vector<1x16x8xf32> to vector<16x8xf32>
    %4 = tpu.iota {dimensions = array<i32: 0>} : vector<16x1xi32>
    %c1_i32 = arith.constant 1 : i32
    %5 = vector.broadcast %c1_i32 : i32 to vector<16x1xi32>
    %6 = arith.cmpi sge, %4, %5 : vector<16x1xi32>
    %c13_i32 = arith.constant 13 : i32
    %7 = vector.broadcast %c13_i32 : i32 to vector<16x1xi32>
    %8 = arith.cmpi slt, %4, %7 : vector<16x1xi32>
    %9 = vector.broadcast %1 : i32 to vector<16x1xi32>
    %10 = arith.cmpi slt, %4, %9 : vector<16x1xi32>
    %c1_i32_2 = arith.constant 1 : i32
    %11 = tpu.dynamic_rotate %3 by %c1_i32_2 dim 0 : vector<16x8xf32>, i32 -> vector<16x8xf32>
    %cst = arith.constant 0.000000e+00 : f32
    %12 = vector.shape_cast %6 : vector<16x1xi1> to vector<16x1xi1>
    %13 = vector.broadcast %12 : vector<16x1xi1> to vector<16x8xi1>
    %14 = vector.broadcast %cst : f32 to vector<16x8xf32>
    %15 = arith.select %13, %11, %14 : vector<16x8xi1>, vector<16x8xf32>
    %c15_i32 = arith.constant 15 : i32
    %16 = tpu.dynamic_rotate %3 by %c15_i32 dim 0 : vector<16x8xf32>, i32 -> vector<16x8xf32>
    %cst_3 = arith.constant 0.000000e+00 : f32
    %17 = vector.shape_cast %8 : vector<16x1xi1> to vector<16x1xi1>
    %18 = vector.broadcast %17 : vector<16x1xi1> to vector<16x8xi1>
    %19 = vector.broadcast %cst_3 : f32 to vector<16x8xf32>
    %20 = arith.select %18, %16, %19 : vector<16x8xi1>, vector<16x8xf32>
    %c0_4 = arith.constant 0 : index
    %c0_5 = arith.constant 0 : index
    %c0_6 = arith.constant 0 : index
    %21 = vector.load %arg3[%c0_4, %c0_5, %c0_6] : memref<3x8x32xf32, #tpu.memory_space<vmem>>, vector<1x8x32xf32>
    %22 = vector.shape_cast %21 : vector<1x8x32xf32> to vector<8x32xf32>
    %cst_7 = arith.constant dense<0.000000e+00> : vector<16x32xf32>
    %23 = tpu.matmul %15, %22, %cst_7 {dimension_numbers = #tpu.dot_dimension_numbers<[1], [0], [0], [1], [0, 0, 1, 1], [], []>} : vector<16x8xf32>, vector<8x32xf32>, vector<16x32xf32> -> vector<16x32xf32>
    %c1 = arith.constant 1 : index
    %c0_8 = arith.constant 0 : index
    %c0_9 = arith.constant 0 : index
    %24 = vector.load %arg3[%c1, %c0_8, %c0_9] : memref<3x8x32xf32, #tpu.memory_space<vmem>>, vector<1x8x32xf32>
    %25 = vector.shape_cast %24 : vector<1x8x32xf32> to vector<8x32xf32>
    %cst_10 = arith.constant dense<0.000000e+00> : vector<16x32xf32>
    %26 = tpu.matmul %3, %25, %cst_10 {dimension_numbers = #tpu.dot_dimension_numbers<[1], [0], [0], [1], [0, 0, 1, 1], [], []>} : vector<16x8xf32>, vector<8x32xf32>, vector<16x32xf32> -> vector<16x32xf32>
    %27 = arith.addf %23, %26 : vector<16x32xf32>
    %c2 = arith.constant 2 : index
    %c0_11 = arith.constant 0 : index
    %c0_12 = arith.constant 0 : index
    %28 = vector.load %arg3[%c2, %c0_11, %c0_12] : memref<3x8x32xf32, #tpu.memory_space<vmem>>, vector<1x8x32xf32>
    %29 = vector.shape_cast %28 : vector<1x8x32xf32> to vector<8x32xf32>
    %cst_13 = arith.constant dense<0.000000e+00> : vector<16x32xf32>
    %30 = tpu.matmul %20, %29, %cst_13 {dimension_numbers = #tpu.dot_dimension_numbers<[1], [0], [0], [1], [0, 0, 1, 1], [], []>} : vector<16x8xf32>, vector<8x32xf32>, vector<16x32xf32> -> vector<16x32xf32>
    %31 = arith.addf %27, %30 : vector<16x32xf32>
    %c0_14 = arith.constant 0 : index
    %c0_15 = arith.constant 0 : index
    %32 = vector.load %arg5[%c0_14, %c0_15] : memref<1x32xf32, #tpu.memory_space<vmem>>, vector<1x32xf32>
    %33 = vector.broadcast %32 : vector<1x32xf32> to vector<16x32xf32>
    %34 = arith.addf %31, %33 : vector<16x32xf32>
    %cst_16 = arith.constant 0.000000e+00 : f32
    %35 = vector.broadcast %cst_16 : f32 to vector<16x32xf32>
    %36 = arith.maximumf %34, %35 : vector<16x32xf32>
    %c1_i32_17 = arith.constant 1 : i32
    %37 = tpu.dynamic_rotate %36 by %c1_i32_17 dim 0 : vector<16x32xf32>, i32 -> vector<16x32xf32>
    %cst_18 = arith.constant 0.000000e+00 : f32
    %38 = vector.shape_cast %6 : vector<16x1xi1> to vector<16x1xi1>
    %39 = vector.broadcast %38 : vector<16x1xi1> to vector<16x32xi1>
    %40 = vector.broadcast %cst_18 : f32 to vector<16x32xf32>
    %41 = arith.select %39, %37, %40 : vector<16x32xi1>, vector<16x32xf32>
    %c15_i32_19 = arith.constant 15 : i32
    %42 = tpu.dynamic_rotate %36 by %c15_i32_19 dim 0 : vector<16x32xf32>, i32 -> vector<16x32xf32>
    %cst_20 = arith.constant 0.000000e+00 : f32
    %43 = vector.shape_cast %8 : vector<16x1xi1> to vector<16x1xi1>
    %44 = vector.broadcast %43 : vector<16x1xi1> to vector<16x32xi1>
    %45 = vector.broadcast %cst_20 : f32 to vector<16x32xf32>
    %46 = arith.select %44, %42, %45 : vector<16x32xi1>, vector<16x32xf32>
    %c0_21 = arith.constant 0 : index
    %c0_22 = arith.constant 0 : index
    %c0_23 = arith.constant 0 : index
    %47 = vector.load %arg4[%c0_21, %c0_22, %c0_23] : memref<3x32x32xf32, #tpu.memory_space<vmem>>, vector<1x32x32xf32>
    %48 = vector.shape_cast %47 : vector<1x32x32xf32> to vector<32x32xf32>
    %cst_24 = arith.constant dense<0.000000e+00> : vector<16x32xf32>
    %49 = tpu.matmul %41, %48, %cst_24 {dimension_numbers = #tpu.dot_dimension_numbers<[1], [0], [0], [1], [0, 0, 1, 1], [], []>} : vector<16x32xf32>, vector<32x32xf32>, vector<16x32xf32> -> vector<16x32xf32>
    %c1_25 = arith.constant 1 : index
    %c0_26 = arith.constant 0 : index
    %c0_27 = arith.constant 0 : index
    %50 = vector.load %arg4[%c1_25, %c0_26, %c0_27] : memref<3x32x32xf32, #tpu.memory_space<vmem>>, vector<1x32x32xf32>
    %51 = vector.shape_cast %50 : vector<1x32x32xf32> to vector<32x32xf32>
    %cst_28 = arith.constant dense<0.000000e+00> : vector<16x32xf32>
    %52 = tpu.matmul %36, %51, %cst_28 {dimension_numbers = #tpu.dot_dimension_numbers<[1], [0], [0], [1], [0, 0, 1, 1], [], []>} : vector<16x32xf32>, vector<32x32xf32>, vector<16x32xf32> -> vector<16x32xf32>
    %53 = arith.addf %49, %52 : vector<16x32xf32>
    %c2_29 = arith.constant 2 : index
    %c0_30 = arith.constant 0 : index
    %c0_31 = arith.constant 0 : index
    %54 = vector.load %arg4[%c2_29, %c0_30, %c0_31] : memref<3x32x32xf32, #tpu.memory_space<vmem>>, vector<1x32x32xf32>
    %55 = vector.shape_cast %54 : vector<1x32x32xf32> to vector<32x32xf32>
    %cst_32 = arith.constant dense<0.000000e+00> : vector<16x32xf32>
    %56 = tpu.matmul %46, %55, %cst_32 {dimension_numbers = #tpu.dot_dimension_numbers<[1], [0], [0], [1], [0, 0, 1, 1], [], []>} : vector<16x32xf32>, vector<32x32xf32>, vector<16x32xf32> -> vector<16x32xf32>
    %57 = arith.addf %53, %56 : vector<16x32xf32>
    %c0_33 = arith.constant 0 : index
    %c0_34 = arith.constant 0 : index
    %58 = vector.load %arg6[%c0_33, %c0_34] : memref<1x32xf32, #tpu.memory_space<vmem>>, vector<1x32xf32>
    %59 = vector.broadcast %58 : vector<1x32xf32> to vector<16x32xf32>
    %60 = arith.addf %57, %59 : vector<16x32xf32>
    %cst_35 = arith.constant 0.000000e+00 : f32
    %61 = vector.broadcast %cst_35 : f32 to vector<16x32xf32>
    %62 = arith.maximumf %60, %61 : vector<16x32xf32>
    %cst_36 = arith.constant 0.000000e+00 : f32
    %63 = vector.shape_cast %10 : vector<16x1xi1> to vector<16x1xi1>
    %64 = vector.broadcast %63 : vector<16x1xi1> to vector<16x32xi1>
    %65 = vector.broadcast %cst_36 : f32 to vector<16x32xf32>
    %66 = arith.select %64, %62, %65 : vector<16x32xi1>, vector<16x32xf32>
    %cst_37 = arith.constant dense<0xFF800000> : vector<32xf32>
    %67 = vector.multi_reduction <maximumf>, %66, %cst_37 [0] : vector<16x32xf32> to vector<32xf32>
    %68 = vector.shape_cast %67 : vector<32xf32> to vector<1x32xf32>
    %c0_38 = arith.constant 0 : index
    %c0_39 = arith.constant 0 : index
    %c0_40 = arith.constant 0 : index
    %69 = vector.load %arg7[%c0_38, %c0_39, %c0_40] : memref<1x16x32xf32, #tpu.memory_space<vmem>>, vector<1x16x32xf32>
    %70 = vector.shape_cast %69 : vector<1x16x32xf32> to vector<16x32xf32>
    %71 = vector.shape_cast %62 : vector<16x32xf32> to vector<1x16x32xf32>
    tpu.vector_store %arg7[%c0_38, %c0_39, %c0_40], %71 {strides = array<i32>} : memref<1x16x32xf32, #tpu.memory_space<vmem>>, vector<1x16x32xf32>,
    %c0_41 = arith.constant 0 : index
    %c0_42 = arith.constant 0 : index
    %c0_43 = arith.constant 0 : index
    %72 = vector.load %arg8[%c0_41, %c0_42, %c0_43] : memref<1x1x32xf32, #tpu.memory_space<vmem>>, vector<1x1x32xf32>
    %73 = vector.shape_cast %72 : vector<1x1x32xf32> to vector<1x32xf32>
    %74 = vector.shape_cast %68 : vector<1x32xf32> to vector<1x1x32xf32>
    tpu.vector_store %arg8[%c0_41, %c0_42, %c0_43], %74 {strides = array<i32>} : memref<1x1x32xf32, #tpu.memory_space<vmem>>, vector<1x1x32xf32>,
    return
  }
  func.func @transform_0(%arg0: i32, %arg1: memref<2xi32, #tpu.memory_space<smem>>) -> (i32, i32, i32) {
    %c0_i32 = arith.constant 0 : i32
    %c0_i32_0 = arith.constant 0 : i32
    %c0_i32_1 = arith.constant 0 : i32
    return %arg0, %c0_i32, %c0_i32_0 : i32, i32, i32
  }
  func.func @transform_1(%arg0: i32, %arg1: memref<2xi32, #tpu.memory_space<smem>>) -> (i32, i32, i32) {
    %c0_i32 = arith.constant 0 : i32
    %c0_i32_0 = arith.constant 0 : i32
    %c0_i32_1 = arith.constant 0 : i32
    %c0_i32_2 = arith.constant 0 : i32
    return %c0_i32, %c0_i32_0, %c0_i32_1 : i32, i32, i32
  }
  func.func @transform_2(%arg0: i32, %arg1: memref<2xi32, #tpu.memory_space<smem>>) -> (i32, i32, i32) {
    %c0_i32 = arith.constant 0 : i32
    %c0_i32_0 = arith.constant 0 : i32
    %c0_i32_1 = arith.constant 0 : i32
    %c0_i32_2 = arith.constant 0 : i32
    return %c0_i32, %c0_i32_0, %c0_i32_1 : i32, i32, i32
  }
  func.func @transform_3(%arg0: i32, %arg1: memref<2xi32, #tpu.memory_space<smem>>) -> (i32, i32) {
    %c0_i32 = arith.constant 0 : i32
    %c0_i32_0 = arith.constant 0 : i32
    %c0_i32_1 = arith.constant 0 : i32
    return %c0_i32, %c0_i32_0 : i32, i32
  }
  func.func @transform_4(%arg0: i32, %arg1: memref<2xi32, #tpu.memory_space<smem>>) -> (i32, i32) {
    %c0_i32 = arith.constant 0 : i32
    %c0_i32_0 = arith.constant 0 : i32
    %c0_i32_1 = arith.constant 0 : i32
    return %c0_i32, %c0_i32_0 : i32, i32
  }
  func.func @transform_5(%arg0: i32, %arg1: memref<2xi32, #tpu.memory_space<smem>>) -> (i32, i32, i32) {
    %c0_i32 = arith.constant 0 : i32
    %c0_i32_0 = arith.constant 0 : i32
    %c0_i32_1 = arith.constant 0 : i32
    return %arg0, %c0_i32, %c0_i32_0 : i32, i32, i32
  }
  func.func @transform_6(%arg0: i32, %arg1: memref<2xi32, #tpu.memory_space<smem>>) -> (i32, i32, i32) {
    %c0_i32 = arith.constant 0 : i32
    %c0_i32_0 = arith.constant 0 : i32
    %c0_i32_1 = arith.constant 0 : i32
    return %arg0, %c0_i32, %c0_i32_0 : i32, i32, i32
  }
}

</mosaic_0001>

<llo_original>
// kernel: tpu_custom_call.1
$region0: #{tpu_custom_call.1}
  #allocation0 [shape = 'u32[]', space=smem, size = 0x4, offset = 0x4, fixed_abs, tag = 'smem constant byte address 0x4 - core index']
  #allocation1 [shape = 'u32[144,128]{1,0:T(1,128)}', space=vmem, size = 0x12000, scoped, tag = 'internal scratch']
  #allocation2 [shape = 's32[1]{0}', space=sflag, size = 0x4, scoped, tag = 'scoped memory for tpu_custom_call.1']
  #allocation3 [shape = 'u8[512]{0}', space=smem, size = 0x200, scoped, tag = 'prefetched SMEM operand 0']
  %s0 = inlined_call_operand.vmem [shape: s32[2], index: 0, kind: input, shape index: {}]
  %s1 = inlined_call_operand.vmem [shape: f32[2,16,8], index: 1, kind: input, shape index: {}]
  %s2 = inlined_call_operand.vmem [shape: f32[3,8,32], index: 2, kind: input, shape index: {}]
  %s3 = inlined_call_operand.hbm [shape: f32[3,32,32], index: 3, kind: input, shape index: {}]
  %s4 = inlined_call_operand.vmem [shape: f32[1,32], index: 4, kind: input, shape index: {}]
  %s5 = inlined_call_operand.vmem [shape: f32[1,32], index: 5, kind: input, shape index: {}]
  %s6 = inlined_call_operand.hbm [shape: f32[2,16,32], index: 6, kind: output, shape index: {0}]
  %s7 = inlined_call_operand.hbm [shape: f32[2,1,32], index: 7, kind: output, shape index: {1}]
  %8 = xla_tuple %s6, %s7
  %s9 = sld [smem:[#allocation0]]
  $region65: #{tpu_custom_call.1} parent=0
    _
  %s11 = ssub.s32 1, %s9
  %s12 = scalar_select 0, %s11, %s9
  %s13 = sshll.u32 %s0, 4
  %s14 = int_to_ptr.vmem [resolvable:$true] %s13
  %16 = dma.vmem_to_smem %s14, 16, [#allocation3], [#allocation2]
  %17 = dma.done [#allocation2], 16
  %18 = sfence
  $region1: #{tpu_custom_call.1} parent=0
    #allocation4 [shape = 'u8[49152]{0}', space=vmem, size = 0xc000, scoped, tag = 'input window, operand 3, single buffered']
    #allocation5 [shape = 's32[2]{0}', space=sflag, size = 0x8, scoped, tag = 'scoped memory for tpu_custom_call.1']
    #allocation6 [shape = 's32[2]{0}', space=sflag, size = 0x8, scoped, tag = 'scoped memory for tpu_custom_call.1']
    #allocation7 [shape = 'u8[16384]{0}', space=vmem, size = 0x4000, scoped, tag = 'output window, operand 0']
    #allocation8 [shape = 'u8[1024]{0}', space=vmem, size = 0x400, scoped, tag = 'output window, operand 1']
    #allocation9 [shape = 's32[2]{0}', space=sflag, size = 0x8, scoped, tag = 'scoped memory for tpu_custom_call.1']
    %19 = vsyncpa [#allocation5], 0
    %20 = vsyncpa [#allocation6], 0
    %s21 = scalar_lea.sflag [#allocation6], 1
    %22 = vsyncpa %s21, 0
    %23 = vsyncpa [#allocation9], 0
    %s24 = scalar_lea.sflag [#allocation9], 1
    %25 = vsyncpa %s24, 0
    loop: start=0, step=1, limit=4
    $region2: #{tpu_custom_call.1} parent=1 // loop_pre_header
      _
    $region3: #{tpu_custom_call.1} parent=1 // loop_header
      %s27 = sphi 0, %s31
      %p28 = scmp.ge.s32.totalorder %s27, 4
      %s37 = sphi 0, %s39
      %s40 = sphi 0, %s37
      %s41 = sphi 0, %s40
      %s57 = sphi 0, %s41
      %s61 = sphi 0, %s61
      %s63 = sphi 0, %s61
      %s64 = sphi 0, %s63
      %s78 = sphi 0, %s64
      %s82 = sphi 0, %s82
      %s84 = sphi 0, %s82
      %s85 = sphi 0, %s84
      %s99 = sphi 0, %s85
      %s103 = sphi 0, %s103
      %s105 = sphi 0, %s103
      %s106 = sphi 0, %s105
      %s120 = sphi 0, %s106
      %s124 = sphi 0, %s124
      %s126 = sphi 0, %s124
      %s127 = sphi 0, %s126
      %s141 = sphi 0, %s127
      %s147 = sphi 0, %s149
      %s150 = sphi 0, %s147
      %s151 = sphi 0, %s150
      %s167 = sphi 0, %s151
      %s173 = sphi 0, %s175
      %s176 = sphi 0, %s173
      %s177 = sphi 0, %s176
      %s193 = sphi 0, %s177
    $region4: #{tpu_custom_call.1} parent=1 // loop_header_branch
      %30 = sbr.rel (%p28) target = $region8
    $region5: #{tpu_custom_call.1} parent=1 // loop_body
      %s32 = ssub.s32 %s27, 1
      %s33 = ssub.s32 %s27, 2
      %s34 = sadd.s32 %s27, 1
      %s35 = ssub.s32 %s27, %s34
      %p36 = scmp.eq.s32.totalorder %s35, 0
      %s38 = sadd.s32 %s37, 1
      %s39 = scalar_select %p36, %s37, %s38
      %p42 = pneg %p36
      %p43 = scmp.eq.s32.totalorder %s27, 1
      %p44 = por %p42, %p43
      %p45 = scmp.ne.s32.totalorder %s37, %s40
      %p46 = scmp.eq.s32.totalorder %s27, 0
      %p47 = por %p45, %p46
      %p48 = scmp.ne.s32.totalorder %s37, %s40
      %p49 = scmp.eq.s32.totalorder %s32, 1
      %p50 = por %p48, %p49
      %p51 = scmp.ne.s32.totalorder %s40, %s41
      %p52 = scmp.eq.s32.totalorder %s32, 0
      %p53 = por %p51, %p52
      %p54 = scmp.ne.s32.totalorder %s40, %s41
      %p55 = scmp.eq.s32.totalorder %s33, 1
      %p56 = por %p54, %p55
      %p58 = scmp.ne.s32.totalorder %s41, %s57
      %p59 = scmp.eq.s32.totalorder %s33, 0
      %p60 = por %p58, %p59
      %s62 = sadd.s32 %s61, 1
      %p65 = scmp.eq.s32.totalorder %s27, 1
      %p66 = scmp.ne.s32.totalorder %s61, %s63
      %p67 = scmp.eq.s32.totalorder %s27, 0
      %p68 = por %p66, %p67
      %p69 = scmp.ne.s32.totalorder %s61, %s63
      %p70 = scmp.eq.s32.totalorder %s32, 1
      %p71 = por %p69, %p70
      %p72 = scmp.ne.s32.totalorder %s63, %s64
      %p73 = scmp.eq.s32.totalorder %s32, 0
      %p74 = por %p72, %p73
      %p75 = scmp.ne.s32.totalorder %s63, %s64
      %p76 = scmp.eq.s32.totalorder %s33, 1
      %p77 = por %p75, %p76
      %p79 = scmp.ne.s32.totalorder %s64, %s78
      %p80 = scmp.eq.s32.totalorder %s33, 0
      %p81 = por %p79, %p80
      %s83 = sadd.s32 %s82, 1
      %p86 = scmp.eq.s32.totalorder %s27, 1
      %p87 = scmp.ne.s32.totalorder %s82, %s84
      %p88 = scmp.eq.s32.totalorder %s27, 0
      %p89 = por %p87, %p88
      %p90 = scmp.ne.s32.totalorder %s82, %s84
      %p91 = scmp.eq.s32.totalorder %s32, 1
      %p92 = por %p90, %p91
      %p93 = scmp.ne.s32.totalorder %s84, %s85
      %p94 = scmp.eq.s32.totalorder %s32, 0
      %p95 = por %p93, %p94
      %p96 = scmp.ne.s32.totalorder %s84, %s85
      %p97 = scmp.eq.s32.totalorder %s33, 1
      %p98 = por %p96, %p97
      %p100 = scmp.ne.s32.totalorder %s85, %s99
      %p101 = scmp.eq.s32.totalorder %s33, 0
      %p102 = por %p100, %p101
      %s104 = sadd.s32 %s103, 1
      %p107 = scmp.eq.s32.totalorder %s27, 1
      %p108 = scmp.ne.s32.totalorder %s103, %s105
      %p109 = scmp.eq.s32.totalorder %s27, 0
      %p110 = por %p108, %p109
      %p111 = scmp.ne.s32.totalorder %s103, %s105
      %p112 = scmp.eq.s32.totalorder %s32, 1
      %p113 = por %p111, %p112
      %p114 = scmp.ne.s32.totalorder %s105, %s106
      %p115 = scmp.eq.s32.totalorder %s32, 0
      %p116 = por %p114, %p115
      %p117 = scmp.ne.s32.totalorder %s105, %s106
      %p118 = scmp.eq.s32.totalorder %s33, 1
      %p119 = por %p117, %p118
      %p121 = scmp.ne.s32.totalorder %s106, %s120
      %p122 = scmp.eq.s32.totalorder %s33, 0
      %p123 = por %p121, %p122
      %s125 = sadd.s32 %s124, 1
      %p128 = scmp.eq.s32.totalorder %s27, 1
      %p129 = scmp.ne.s32.totalorder %s124, %s126
      %p130 = scmp.eq.s32.totalorder %s27, 0
      %p131 = por %p129, %p130
      %p132 = scmp.ne.s32.totalorder %s124, %s126
      %p133 = scmp.eq.s32.totalorder %s32, 1
      %p134 = por %p132, %p133
      %p135 = scmp.ne.s32.totalorder %s126, %s127
      %p136 = scmp.eq.s32.totalorder %s32, 0
      %p137 = por %p135, %p136
      %p138 = scmp.ne.s32.totalorder %s126, %s127
      %p139 = scmp.eq.s32.totalorder %s33, 1
      %p140 = por %p138, %p139
      %p142 = scmp.ne.s32.totalorder %s127, %s141
      %p143 = scmp.eq.s32.totalorder %s33, 0
      %p144 = por %p142, %p143
      %s145 = ssub.s32 %s27, %s34
      %p146 = scmp.eq.s32.totalorder %s145, 0
      %s148 = sadd.s32 %s147, 1
      %s149 = scalar_select %p146, %s147, %s148
      %p152 = pneg %p146
      %p153 = scmp.eq.s32.totalorder %s27, 1
      %p154 = por %p152, %p153
      %p155 = scmp.ne.s32.totalorder %s147, %s150
      %p156 = scmp.eq.s32.totalorder %s27, 0
      %p157 = por %p155, %p156
      %p158 = scmp.ne.s32.totalorder %s147, %s150
      %p159 = scmp.eq.s32.totalorder %s32, 1
      %p160 = por %p158, %p159
      %p161 = scmp.ne.s32.totalorder %s150, %s151
      %p162 = scmp.eq.s32.totalorder %s32, 0
      %p163 = por %p161, %p162
      %p164 = scmp.ne.s32.totalorder %s150, %s151
      %p165 = scmp.eq.s32.totalorder %s33, 1
      %p166 = por %p164, %p165
      %p168 = scmp.ne.s32.totalorder %s151, %s167
      %p169 = scmp.eq.s32.totalorder %s33, 0
      %p170 = por %p168, %p169
      %s171 = ssub.s32 %s27, %s34
      %p172 = scmp.eq.s32.totalorder %s171, 0
      %s174 = sadd.s32 %s173, 1
      %s175 = scalar_select %p172, %s173, %s174
      %p178 = pneg %p172
      %p179 = scmp.eq.s32.totalorder %s27, 1
      %p180 = por %p178, %p179
      %p181 = scmp.ne.s32.totalorder %s173, %s176
      %p182 = scmp.eq.s32.totalorder %s27, 0
      %p183 = por %p181, %p182
      %p184 = scmp.ne.s32.totalorder %s173, %s176
      %p185 = scmp.eq.s32.totalorder %s32, 1
      %p186 = por %p184, %p185
      %p187 = scmp.ne.s32.totalorder %s176, %s177
      %p188 = scmp.eq.s32.totalorder %s32, 0
      %p189 = por %p187, %p188
      %p190 = scmp.ne.s32.totalorder %s176, %s177
      %p191 = scmp.eq.s32.totalorder %s33, 1
      %p192 = por %p190, %p191
      %p194 = scmp.ne.s32.totalorder %s177, %s193
      %p195 = scmp.eq.s32.totalorder %s33, 0
      %p196 = por %p194, %p195
      %p197 = scmp.le.s32.totalorder 1, %s27
      %p198 = scmp.lt.s32.totalorder %s27, 3
      %p199 = pnand %p197, %p198
      %p200 = pneg %p199
      // Predicated region
      $region9: #{tpu_custom_call.1} parent=5 // pred_check
        _
      $region10: #{tpu_custom_call.1} parent=5 // pred_check_branch
        %202 = sbr.rel (%p199) target = $region12
      $region11: #{tpu_custom_call.1} parent=5 // pred_region
        %s203 = ssub.s32 %s27, 1
        // Predicated region
        $region13: #{tpu_custom_call.1} parent=11 // pred_check
          %p204 = pneg %p74
        $region14: #{tpu_custom_call.1} parent=11 // pred_check_branch
          %206 = sbr.rel (%p204) target = $region16
        $region15: #{tpu_custom_call.1} parent=11 // pred_region
          _
        $region16: #{tpu_custom_call.1} parent=11 // pred_fallthru
          _
        // Predicated region
        $region17: #{tpu_custom_call.1} parent=11 // pred_check
          %p207 = pneg %p95
        $region18: #{tpu_custom_call.1} parent=11 // pred_check_branch
          %209 = sbr.rel (%p207) target = $region20
        $region19: #{tpu_custom_call.1} parent=11 // pred_region
          %s211 = ssub.s32 1536, 1536
          %212 = vsyncadd [#allocation5], %s211
          %s213 = sshll.u32 [#allocation4], 4
          %s214 = int_to_ptr.vmem [resolvable:$true] %s213
          %219 = dma.hbm_to_vmem [thread:$0]  %s3, 1536, %s214, [#allocation5], 128, 128, 8
        $region20: #{tpu_custom_call.1} parent=11 // pred_fallthru
          _
        // Predicated region
        $region21: #{tpu_custom_call.1} parent=11 // pred_check
          %p220 = pneg %p116
        $region22: #{tpu_custom_call.1} parent=11 // pred_check_branch
          %222 = sbr.rel (%p220) target = $region24
        $region23: #{tpu_custom_call.1} parent=11 // pred_region
          _
        $region24: #{tpu_custom_call.1} parent=11 // pred_fallthru
          _
        // Predicated region
        $region25: #{tpu_custom_call.1} parent=11 // pred_check
          %p223 = pneg %p137
        $region26: #{tpu_custom_call.1} parent=11 // pred_check_branch
          %225 = sbr.rel (%p223) target = $region28
        $region27: #{tpu_custom_call.1} parent=11 // pred_region
          _
        $region28: #{tpu_custom_call.1} parent=11 // pred_fallthru
          _
      $region12: #{tpu_custom_call.1} parent=5 // pred_fallthru
        _
      %p226 = scmp.lt.s32.totalorder %s27, 2
      // Predicated region
      $region29: #{tpu_custom_call.1} parent=5 // pred_check
        %p227 = pneg %p226
      $region30: #{tpu_custom_call.1} parent=5 // pred_check_branch
        %229 = sbr.rel (%p227) target = $region32
      $region31: #{tpu_custom_call.1} parent=5 // pred_region
        // Predicated region
        $region33: #{tpu_custom_call.1} parent=31 // pred_check
          %p230 = pneg %p47
        $region34: #{tpu_custom_call.1} parent=31 // pred_check_branch
          %232 = sbr.rel (%p230) target = $region36
        $region35: #{tpu_custom_call.1} parent=31 // pred_region
          %p233 = scmp.lt.s32.totalorder %s27, 1
          %s234 = scalar_select %p233, %s27, 1
          %s235 = smul.addr %s234, 2
          %s236 = smul.addr %s235, 8
          %s237 = scalar_lea.vmem %s1, %s236
        $region36: #{tpu_custom_call.1} parent=31 // pred_fallthru
          _
      $region32: #{tpu_custom_call.1} parent=5 // pred_fallthru
        _
      %p238 = scmp.le.s32.totalorder 1, %s27
      %p239 = scmp.lt.s32.totalorder %s27, 3
      %p240 = pnand %p238, %p239
      %p241 = pneg %p240
      // Predicated region
      $region37: #{tpu_custom_call.1} parent=5 // pred_check
        _
      $region38: #{tpu_custom_call.1} parent=5 // pred_check_branch
        %243 = sbr.rel (%p240) target = $region40
      $region39: #{tpu_custom_call.1} parent=5 // pred_region
        %s244 = ssub.s32 %s27, 1
        // Predicated region
        $region41: #{tpu_custom_call.1} parent=39 // pred_check
          %p245 = pneg %p95
        $region42: #{tpu_custom_call.1} parent=39 // pred_check_branch
          %247 = sbr.rel (%p245) target = $region44
        $region43: #{tpu_custom_call.1} parent=39 // pred_region
          %248 = dma.done [#allocation5], 1536
        $region44: #{tpu_custom_call.1} parent=39 // pred_fallthru
          _
        %p249 = scmp.lt.s32.totalorder %s32, 1
        %s250 = scalar_select %p249, %s32, 1
        %s251 = smul.addr %s250, 2
        %s252 = smul.addr %s251, 8
        %s253 = scalar_lea.vmem %s1, %s252
        %p254 = pneg %p53
        %p255 = pneg %p50
        %p256 = pneg %p74
        %p257 = pneg %p71
        %p258 = pneg %p95
        %p259 = pneg %p92
        %p260 = pneg %p116
        %p261 = pneg %p113
        %p262 = pneg %p137
        %p263 = pneg %p134
        %p264 = pneg %p163
        %p265 = pneg %p160
        %s266 = sand.u32 %s150, 1
        %s267 = scalar_lea.sflag [#allocation6], %s266
        %s268 = sand.u32 %s150, 1
        %s269 = smul.addr %s268, 16
        %s270 = scalar_lea.vmem [#allocation7], %s269
        %p271 = pneg %p189
        %p272 = pneg %p186
        %s273 = sand.u32 %s176, 1
        %s274 = scalar_lea.sflag [#allocation9], %s273
        %s275 = sand.u32 %s176, 1
        %s276 = scalar_lea.vmem [#allocation8], %s275
        %p277 = scmp.lt.s32.totalorder %s32, 1
        %s278 = scalar_select %p277, %s32, 1
        %s279 = smul.addr %s278, 2
        %s280 = smul.addr %s279, 8
        %s281 = scalar_lea.vmem %s1, %s280
        %s282 = sld [smem:[#allocation3 + %s32]]
        %v283 = vld [vmem:[%s281] sm:$0xff]
        %v284 = vld [vmem:[%s281 + $0x8] sm:$0xff]
        %v285 = vlaneseq
        %v286 = vshrl.u32 %v285, 7
        %v287 = vadd.s32 %v286, 8
        %vm288 = vcmp.ge.s32.totalorder %v286, 1
        %vm289 = vcmp.ge.s32.totalorder %v287, 1
        %vm290 = vcmp.lt.s32.totalorder %v286, 13
        %vm291 = vcmp.lt.s32.totalorder %v287, 13
        %v292 = vstv %s282
        %vm293 = vcmp.lt.s32.totalorder %v286, %v292
        %vm294 = vcmp.lt.s32.totalorder %v287, %v292
        %v295 = vrot.slane %v283, 7
        %v296 = vrot.slane %v284, 7
        %vm297 = vcmp.lt.s32.totalorder %v286, 1
        %v298 = vsel %vm297, %v295, %v296
        %v299 = vsel %vm297, %v296, %v295
        %v300 = vsel %vm288, 1, 0
        %v301 = vsel %vm289, 1, 0
        %vm302 = vcmp.eq.s32.totalorder %v300, 1
        %vm303 = vcmp.eq.s32.totalorder %v301, 1
        %v304 = vsel %vm302, %v299, 0.0
        %v305 = vsel %vm303, %v298, 0.0
        %v306 = vrot.slane %v283, 1
        %v307 = vrot.slane %v284, 1
        %vm308 = vcmp.lt.s32.totalorder %v286, 7
        %v309 = vsel %vm308, %v306, %v307
        %v310 = vsel %vm308, %v307, %v306
        %v311 = vsel %vm290, 1, 0
        %v312 = vsel %vm291, 1, 0
        %vm313 = vcmp.eq.s32.totalorder %v311, 1
        %vm314 = vcmp.eq.s32.totalorder %v312, 1
        %v315 = vsel %vm313, %v309, 0.0
        %v316 = vsel %vm314, %v310, 0.0
        %v317 = vld [vmem:[%s2] sm:$0xff]
        %s318 = scalar_lea.vmem %s2, 8
        %v319 = vld [vmem:[%s318] sm:$0xff]
        %vm320 = vcmask 64512
        %v322 = vsel %vm320, %v283, 0
        %v325 = vsel %vm320, %v284, 0
        %327 = vmatprep.subr.mxu0 0.0
        %328 = vmatpush1.msra.mxu0 0.0
        %329 = vmatprep.subr.mxu0 0.0
        %330 = vmatpush1.msra.mxu0 0.0
        %331 = vmatprep.subr.mxu0 0.0
        %332 = vmatpush1.msra.mxu0 0.0
        %333 = vmatprep.subr.mxu0 0.0
        %334 = vmatpush1.msra.mxu0 0.0
        %335 = vmatprep.subr.mxu0 0.0
        %336 = vmatpush1.msra.mxu0 0.0
        %337 = vmatprep.subr.mxu0 0.0
        %338 = vmatpush1.msra.mxu0 0.0
        %339 = vmatprep.subr.mxu0 0.0
        %340 = vmatpush1.msra.mxu0 0.0
        %341 = vmatprep.subr.mxu0 0.0
        %342 = vmatpush1.msra.mxu0 0.0
        %343 = vmatprep.subr.mxu0 0.0
        %344 = vmatpush1.msra.mxu0 0.0
        %345 = vmatprep.subr.mxu0 0.0
        %346 = vmatpush1.msra.mxu0 0.0
        %347 = vmatprep.subr.mxu0 0.0
        %348 = vmatpush1.msra.mxu0 0.0
        %349 = vmatprep.subr.mxu0 0.0
        %350 = vmatpush1.msra.mxu0 0.0
        %351 = vmatprep.subr.mxu0 0.0
        %352 = vmatpush1.msra.mxu0 0.0
        %353 = vmatprep.subr.mxu0 0.0
        %354 = vmatpush1.msra.mxu0 0.0
        %355 = vmatprep.subr.mxu0 0.0
        %356 = vmatpush1.msra.mxu0 0.0
        %357 = vmatprep.subr.mxu0 0.0
        %358 = vmatpush1.msra.mxu0 %v319
        %359 = vmatprep.subr.mxu0 0.0
        %360 = vmatpush2.msra.mxu0 0.0
        %361 = vmatprep.subr.mxu0 0.0
        %362 = vmatpush2.msra.mxu0 0.0
        %363 = vmatprep.subr.mxu0 0.0
        %364 = vmatpush2.msra.mxu0 0.0
        %365 = vmatprep.subr.mxu0 0.0
        %366 = vmatpush2.msra.mxu0 0.0
        %367 = vmatprep.subr.mxu0 0.0
        %368 = vmatpush2.msra.mxu0 0.0
        %369 = vmatprep.subr.mxu0 0.0
        %370 = vmatpush2.msra.mxu0 0.0
        %371 = vmatprep.subr.mxu0 0.0
        %372 = vmatpush2.msra.mxu0 0.0
        %373 = vmatprep.subr.mxu0 0.0
        %374 = vmatpush2.msra.mxu0 0.0
        %375 = vmatprep.subr.mxu0 0.0
        %376 = vmatpush2.msra.mxu0 0.0
        %377 = vmatprep.subr.mxu0 0.0
        %378 = vmatpush2.msra.mxu0 0.0
        %379 = vmatprep.subr.mxu0 0.0
        %380 = vmatpush2.msra.mxu0 0.0
        %381 = vmatprep.subr.mxu0 0.0
        %382 = vmatpush2.msra.mxu0 0.0
        %383 = vmatprep.subr.mxu0 0.0
        %384 = vmatpush2.msra.mxu0 0.0
        %385 = vmatprep.subr.mxu0 0.0
        %386 = vmatpush2.msra.mxu0 0.0
        %387 = vmatprep.subr.mxu0 0.0
        %388 = vmatpush2.msra.mxu0 0.0
        %389 = vmatprep.subr.mxu0 0.0
        %390 = vmatpush2.msra.mxu0 0.0
        %391 = vmatprep.mubr.f32.mxu0 0.0
        %392 = vmatmul.mubr.f32.gmra.mxu0 %v322
        %v393 = vpop.f32.mrf.mxu0
        %v394 = vadd.f32 0.0, %v393
        %v395 = vpop.f32.mrf.mxu0
        %396 = vmatprep.mubr.f32.mxu0 0.0
        %397 = vmatmul.mubr.f32.gmra.mxu0 %v325
        %v398 = vpop.f32.mrf.mxu0
        %v399 = vadd.f32 0.0, %v398
        %v400 = vpop.f32.mrf.mxu0
        %401 = vdwg.mxu0
        %v403 = vsel %vm320, %v304, 0
        %v406 = vsel %vm320, %v305, 0
        %408 = vmatprep.subr.mxu0 0.0
        %409 = vmatpush1.msra.mxu0 0.0
        %410 = vmatprep.subr.mxu0 0.0
        %411 = vmatpush1.msra.mxu0 0.0
        %412 = vmatprep.subr.mxu0 0.0
        %413 = vmatpush1.msra.mxu0 0.0
        %414 = vmatprep.subr.mxu0 0.0
        %415 = vmatpush1.msra.mxu0 0.0
        %416 = vmatprep.subr.mxu0 0.0
        %417 = vmatpush1.msra.mxu0 0.0
        %418 = vmatprep.subr.mxu0 0.0
        %419 = vmatpush1.msra.mxu0 0.0
        %420 = vmatprep.subr.mxu0 0.0
        %421 = vmatpush1.msra.mxu0 0.0
        %422 = vmatprep.subr.mxu0 0.0
        %423 = vmatpush1.msra.mxu0 0.0
        %424 = vmatprep.subr.mxu0 0.0
        %425 = vmatpush1.msra.mxu0 0.0
        %426 = vmatprep.subr.mxu0 0.0
        %427 = vmatpush1.msra.mxu0 0.0
        %428 = vmatprep.subr.mxu0 0.0
        %429 = vmatpush1.msra.mxu0 0.0
        %430 = vmatprep.subr.mxu0 0.0
        %431 = vmatpush1.msra.mxu0 0.0
        %432 = vmatprep.subr.mxu0 0.0
        %433 = vmatpush1.msra.mxu0 0.0
        %434 = vmatprep.subr.mxu0 0.0
        %435 = vmatpush1.msra.mxu0 0.0
        %436 = vmatprep.subr.mxu0 0.0
        %437 = vmatpush1.msra.mxu0 0.0
        %438 = vmatprep.subr.mxu0 0.0
        %439 = vmatpush1.msra.mxu0 %v317
        %440 = vmatprep.subr.mxu0 0.0
        %441 = vmatpush2.msra.mxu0 0.0
        %442 = vmatprep.subr.mxu0 0.0
        %443 = vmatpush2.msra.mxu0 0.0
        %444 = vmatprep.subr.mxu0 0.0
        %445 = vmatpush2.msra.mxu0 0.0
        %446 = vmatprep.subr.mxu0 0.0
        %447 = vmatpush2.msra.mxu0 0.0
        %448 = vmatprep.subr.mxu0 0.0
        %449 = vmatpush2.msra.mxu0 0.0
        %450 = vmatprep.subr.mxu0 0.0
        %451 = vmatpush2.msra.mxu0 0.0
        %452 = vmatprep.subr.mxu0 0.0
        %453 = vmatpush2.msra.mxu0 0.0
        %454 = vmatprep.subr.mxu0 0.0
        %455 = vmatpush2.msra.mxu0 0.0
        %456 = vmatprep.subr.mxu0 0.0
        %457 = vmatpush2.msra.mxu0 0.0
        %458 = vmatprep.subr.mxu0 0.0
        %459 = vmatpush2.msra.mxu0 0.0
        %460 = vmatprep.subr.mxu0 0.0
        %461 = vmatpush2.msra.mxu0 0.0
        %462 = vmatprep.subr.mxu0 0.0
        %463 = vmatpush2.msra.mxu0 0.0
        %464 = vmatprep.subr.mxu0 0.0
        %465 = vmatpush2.msra.mxu0 0.0
        %466 = vmatprep.subr.mxu0 0.0
        %467 = vmatpush2.msra.mxu0 0.0
        %468 = vmatprep.subr.mxu0 0.0
        %469 = vmatpush2.msra.mxu0 0.0
        %470 = vmatprep.subr.mxu0 0.0
        %471 = vmatpush2.msra.mxu0 0.0
        %472 = vmatprep.mubr.f32.mxu0 0.0
        %473 = vmatmul.mubr.f32.gmra.mxu0 %v403
        %v474 = vpop.f32.mrf.mxu0
        %v475 = vadd.f32 %v394, %v474
        %v476 = vpop.f32.mrf.mxu0
        %477 = vmatprep.mubr.f32.mxu0 0.0
        %478 = vmatmul.mubr.f32.gmra.mxu0 %v406
        %v479 = vpop.f32.mrf.mxu0
        %v480 = vadd.f32 %v399, %v479
        %v481 = vpop.f32.mrf.mxu0
        %482 = vdwg.mxu0
        %s483 = scalar_lea.vmem %s2, 16
        %v484 = vld [vmem:[%s483] sm:$0xff]
        %v486 = vsel %vm320, %v315, 0
        %v489 = vsel %vm320, %v316, 0
        %491 = vmatprep.subr.mxu0 0.0
        %492 = vmatpush1.msra.mxu0 0.0
        %493 = vmatprep.subr.mxu0 0.0
        %494 = vmatpush1.msra.mxu0 0.0
        %495 = vmatprep.subr.mxu0 0.0
        %496 = vmatpush1.msra.mxu0 0.0
        %497 = vmatprep.subr.mxu0 0.0
        %498 = vmatpush1.msra.mxu0 0.0
        %499 = vmatprep.subr.mxu0 0.0
        %500 = vmatpush1.msra.mxu0 0.0
        %501 = vmatprep.subr.mxu0 0.0
        %502 = vmatpush1.msra.mxu0 0.0
        %503 = vmatprep.subr.mxu0 0.0
        %504 = vmatpush1.msra.mxu0 0.0
        %505 = vmatprep.subr.mxu0 0.0
        %506 = vmatpush1.msra.mxu0 0.0
        %507 = vmatprep.subr.mxu0 0.0
        %508 = vmatpush1.msra.mxu0 0.0
        %509 = vmatprep.subr.mxu0 0.0
        %510 = vmatpush1.msra.mxu0 0.0
        %511 = vmatprep.subr.mxu0 0.0
        %512 = vmatpush1.msra.mxu0 0.0
        %513 = vmatprep.subr.mxu0 0.0
        %514 = vmatpush1.msra.mxu0 0.0
        %515 = vmatprep.subr.mxu0 0.0
        %516 = vmatpush1.msra.mxu0 0.0
        %517 = vmatprep.subr.mxu0 0.0
        %518 = vmatpush1.msra.mxu0 0.0
        %519 = vmatprep.subr.mxu0 0.0
        %520 = vmatpush1.msra.mxu0 0.0
        %521 = vmatprep.subr.mxu0 0.0
        %522 = vmatpush1.msra.mxu0 %v484
        %523 = vmatprep.subr.mxu0 0.0
        %524 = vmatpush2.msra.mxu0 0.0
        %525 = vmatprep.subr.mxu0 0.0
        %526 = vmatpush2.msra.mxu0 0.0
        %527 = vmatprep.subr.mxu0 0.0
        %528 = vmatpush2.msra.mxu0 0.0
        %529 = vmatprep.subr.mxu0 0.0
        %530 = vmatpush2.msra.mxu0 0.0
        %531 = vmatprep.subr.mxu0 0.0
        %532 = vmatpush2.msra.mxu0 0.0
        %533 = vmatprep.subr.mxu0 0.0
        %534 = vmatpush2.msra.mxu0 0.0
        %535 = vmatprep.subr.mxu0 0.0
        %536 = vmatpush2.msra.mxu0 0.0
        %537 = vmatprep.subr.mxu0 0.0
        %538 = vmatpush2.msra.mxu0 0.0
        %539 = vmatprep.subr.mxu0 0.0
        %540 = vmatpush2.msra.mxu0 0.0
        %541 = vmatprep.subr.mxu0 0.0
        %542 = vmatpush2.msra.mxu0 0.0
        %543 = vmatprep.subr.mxu0 0.0
        %544 = vmatpush2.msra.mxu0 0.0
        %545 = vmatprep.subr.mxu0 0.0
        %546 = vmatpush2.msra.mxu0 0.0
        %547 = vmatprep.subr.mxu0 0.0
        %548 = vmatpush2.msra.mxu0 0.0
        %549 = vmatprep.subr.mxu0 0.0
        %550 = vmatpush2.msra.mxu0 0.0
        %551 = vmatprep.subr.mxu0 0.0
        %552 = vmatpush2.msra.mxu0 0.0
        %553 = vmatprep.subr.mxu0 0.0
        %554 = vmatpush2.msra.mxu0 0.0
        %555 = vmatprep.mubr.f32.mxu0 0.0
        %556 = vmatmul.mubr.f32.gmra.mxu0 %v486
        %v557 = vpop.f32.mrf.mxu0
        %v558 = vadd.f32 0.0, %v557
        %v559 = vpop.f32.mrf.mxu0
        %560 = vmatprep.mubr.f32.mxu0 0.0
        %561 = vmatmul.mubr.f32.gmra.mxu0 %v489
        %v562 = vpop.f32.mrf.mxu0
        %v563 = vadd.f32 0.0, %v562
        %v564 = vpop.f32.mrf.mxu0
        %565 = vdwg.mxu0
        %v566 = vadd.f32 %v475, %v558
        %v567 = vadd.f32 %v480, %v563
        %v568 = vld [vmem:[%s4] sm:$0x1]
        %v570 = vlaneseq
        %v571 = vshrl.u32 %v570, 7
        %v572 = vsub.s32 0, %v571
        %v573 = vrot.slane %v568, %v572
        %v575 = vadd.f32 %v566, %v573
        %v576 = vadd.f32 %v567, %v573
        %v577 = vmax.f32 %v575, 0.0
        %v578 = vmax.f32 %v576, 0.0
        %v579 = vrot.slane %v577, 7
        %v580 = vrot.slane %v578, 7
        %v581 = vsel %vm297, %v579, %v580
        %v582 = vsel %vm297, %v580, %v579
        %v583 = vsel %vm302, %v582, 0.0
        %v584 = vsel %vm303, %v581, 0.0
        %v585 = vrot.slane %v577, 1
        %v586 = vrot.slane %v578, 1
        %v587 = vsel %vm308, %v585, %v586
        %v588 = vsel %vm308, %v586, %v585
        %v589 = vsel %vm313, %v587, 0.0
        %v590 = vsel %vm314, %v588, 0.0
        %v591 = vld [vmem:[#allocation4] sm:$0xff]
        %v592 = vld [vmem:[#allocation4 + $0x8] sm:$0xff]
        %v593 = vld [vmem:[#allocation4 + $0x10] sm:$0xff]
        %v594 = vld [vmem:[#allocation4 + $0x18] sm:$0xff]
        %s595 = scalar_lea.vmem [#allocation4], 32
        %v596 = vld [vmem:[%s595] sm:$0xff]
        %v597 = vld [vmem:[%s595 + $0x8] sm:$0xff]
        %v598 = vld [vmem:[%s595 + $0x10] sm:$0xff]
        %v599 = vld [vmem:[%s595 + $0x18] sm:$0xff]
        %vm600 = vcmask 261120
        %v602 = vsel %vm600, %v577, 0
        %v605 = vsel %vm600, %v578, 0
        %607 = vmatprep.subr.mxu0 0.0
        %608 = vmatpush1.msra.mxu0 0.0
        %609 = vmatprep.subr.mxu0 0.0
        %610 = vmatpush1.msra.mxu0 0.0
        %611 = vmatprep.subr.mxu0 0.0
        %612 = vmatpush1.msra.mxu0 0.0
        %613 = vmatprep.subr.mxu0 0.0
        %614 = vmatpush1.msra.mxu0 0.0
        %615 = vmatprep.subr.mxu0 0.0
        %616 = vmatpush1.msra.mxu0 0.0
        %617 = vmatprep.subr.mxu0 0.0
        %618 = vmatpush1.msra.mxu0 0.0
        %619 = vmatprep.subr.mxu0 0.0
        %620 = vmatpush1.msra.mxu0 0.0
        %621 = vmatprep.subr.mxu0 0.0
        %622 = vmatpush1.msra.mxu0 0.0
        %623 = vmatprep.subr.mxu0 0.0
        %624 = vmatpush1.msra.mxu0 0.0
        %625 = vmatprep.subr.mxu0 0.0
        %626 = vmatpush1.msra.mxu0 0.0
        %627 = vmatprep.subr.mxu0 0.0
        %628 = vmatpush1.msra.mxu0 0.0
        %629 = vmatprep.subr.mxu0 0.0
        %630 = vmatpush1.msra.mxu0 0.0
        %631 = vmatprep.subr.mxu0 0.0
        %632 = vmatpush1.msra.mxu0 %v599
        %633 = vmatprep.subr.mxu0 0.0
        %634 = vmatpush1.msra.mxu0 %v598
        %635 = vmatprep.subr.mxu0 0.0
        %636 = vmatpush1.msra.mxu0 %v597
        %637 = vmatprep.subr.mxu0 0.0
        %638 = vmatpush1.msra.mxu0 %v596
        %639 = vmatprep.subr.mxu0 0.0
        %640 = vmatpush2.msra.mxu0 0.0
        %641 = vmatprep.subr.mxu0 0.0
        %642 = vmatpush2.msra.mxu0 0.0
        %643 = vmatprep.subr.mxu0 0.0
        %644 = vmatpush2.msra.mxu0 0.0
        %645 = vmatprep.subr.mxu0 0.0
        %646 = vmatpush2.msra.mxu0 0.0
        %647 = vmatprep.subr.mxu0 0.0
        %648 = vmatpush2.msra.mxu0 0.0
        %649 = vmatprep.subr.mxu0 0.0
        %650 = vmatpush2.msra.mxu0 0.0
        %651 = vmatprep.subr.mxu0 0.0
        %652 = vmatpush2.msra.mxu0 0.0
        %653 = vmatprep.subr.mxu0 0.0
        %654 = vmatpush2.msra.mxu0 0.0
        %655 = vmatprep.subr.mxu0 0.0
        %656 = vmatpush2.msra.mxu0 0.0
        %657 = vmatprep.subr.mxu0 0.0
        %658 = vmatpush2.msra.mxu0 0.0
        %659 = vmatprep.subr.mxu0 0.0
        %660 = vmatpush2.msra.mxu0 0.0
        %661 = vmatprep.subr.mxu0 0.0
        %662 = vmatpush2.msra.mxu0 0.0
        %663 = vmatprep.subr.mxu0 0.0
        %664 = vmatpush2.msra.mxu0 0.0
        %665 = vmatprep.subr.mxu0 0.0
        %666 = vmatpush2.msra.mxu0 0.0
        %667 = vmatprep.subr.mxu0 0.0
        %668 = vmatpush2.msra.mxu0 0.0
        %669 = vmatprep.subr.mxu0 0.0
        %670 = vmatpush2.msra.mxu0 0.0
        %671 = vmatprep.mubr.f32.mxu0 0.0
        %672 = vmatmul.mubr.f32.gmra.mxu0 %v602
        %v673 = vpop.f32.mrf.mxu0
        %v674 = vadd.f32 0.0, %v673
        %v675 = vpop.f32.mrf.mxu0
        %676 = vmatprep.mubr.f32.mxu0 0.0
        %677 = vmatmul.mubr.f32.gmra.mxu0 %v605
        %v678 = vpop.f32.mrf.mxu0
        %v679 = vadd.f32 0.0, %v678
        %v680 = vpop.f32.mrf.mxu0
        %681 = vdwg.mxu0
        %v683 = vsel %vm600, %v583, 0
        %v686 = vsel %vm600, %v584, 0
        %688 = vmatprep.subr.mxu0 0.0
        %689 = vmatpush1.msra.mxu0 0.0
        %690 = vmatprep.subr.mxu0 0.0
        %691 = vmatpush1.msra.mxu0 0.0
        %692 = vmatprep.subr.mxu0 0.0
        %693 = vmatpush1.msra.mxu0 0.0
        %694 = vmatprep.subr.mxu0 0.0
        %695 = vmatpush1.msra.mxu0 0.0
        %696 = vmatprep.subr.mxu0 0.0
        %697 = vmatpush1.msra.mxu0 0.0
        %698 = vmatprep.subr.mxu0 0.0
        %699 = vmatpush1.msra.mxu0 0.0
        %700 = vmatprep.subr.mxu0 0.0
        %701 = vmatpush1.msra.mxu0 0.0
        %702 = vmatprep.subr.mxu0 0.0
        %703 = vmatpush1.msra.mxu0 0.0
        %704 = vmatprep.subr.mxu0 0.0
        %705 = vmatpush1.msra.mxu0 0.0
        %706 = vmatprep.subr.mxu0 0.0
        %707 = vmatpush1.msra.mxu0 0.0
        %708 = vmatprep.subr.mxu0 0.0
        %709 = vmatpush1.msra.mxu0 0.0
        %710 = vmatprep.subr.mxu0 0.0
        %711 = vmatpush1.msra.mxu0 0.0
        %712 = vmatprep.subr.mxu0 0.0
        %713 = vmatpush1.msra.mxu0 %v594
        %714 = vmatprep.subr.mxu0 0.0
        %715 = vmatpush1.msra.mxu0 %v593
        %716 = vmatprep.subr.mxu0 0.0
        %717 = vmatpush1.msra.mxu0 %v592
        %718 = vmatprep.subr.mxu0 0.0
        %719 = vmatpush1.msra.mxu0 %v591
        %720 = vmatprep.subr.mxu0 0.0
        %721 = vmatpush2.msra.mxu0 0.0
        %722 = vmatprep.subr.mxu0 0.0
        %723 = vmatpush2.msra.mxu0 0.0
        %724 = vmatprep.subr.mxu0 0.0
        %725 = vmatpush2.msra.mxu0 0.0
        %726 = vmatprep.subr.mxu0 0.0
        %727 = vmatpush2.msra.mxu0 0.0
        %728 = vmatprep.subr.mxu0 0.0
        %729 = vmatpush2.msra.mxu0 0.0
        %730 = vmatprep.subr.mxu0 0.0
        %731 = vmatpush2.msra.mxu0 0.0
        %732 = vmatprep.subr.mxu0 0.0
        %733 = vmatpush2.msra.mxu0 0.0
        %734 = vmatprep.subr.mxu0 0.0
        %735 = vmatpush2.msra.mxu0 0.0
        %736 = vmatprep.subr.mxu0 0.0
        %737 = vmatpush2.msra.mxu0 0.0
        %738 = vmatprep.subr.mxu0 0.0
        %739 = vmatpush2.msra.mxu0 0.0
        %740 = vmatprep.subr.mxu0 0.0
        %741 = vmatpush2.msra.mxu0 0.0
        %742 = vmatprep.subr.mxu0 0.0
        %743 = vmatpush2.msra.mxu0 0.0
        %744 = vmatprep.subr.mxu0 0.0
        %745 = vmatpush2.msra.mxu0 0.0
        %746 = vmatprep.subr.mxu0 0.0
        %747 = vmatpush2.msra.mxu0 0.0
        %748 = vmatprep.subr.mxu0 0.0
        %749 = vmatpush2.msra.mxu0 0.0
        %750 = vmatprep.subr.mxu0 0.0
        %751 = vmatpush2.msra.mxu0 0.0
        %752 = vmatprep.mubr.f32.mxu0 0.0
        %753 = vmatmul.mubr.f32.gmra.mxu0 %v683
        %v754 = vpop.f32.mrf.mxu0
        %v755 = vadd.f32 %v674, %v754
        %v756 = vpop.f32.mrf.mxu0
        %757 = vmatprep.mubr.f32.mxu0 0.0
        %758 = vmatmul.mubr.f32.gmra.mxu0 %v686
        %v759 = vpop.f32.mrf.mxu0
        %v760 = vadd.f32 %v679, %v759
        %v761 = vpop.f32.mrf.mxu0
        %762 = vdwg.mxu0
        %s763 = scalar_lea.vmem [#allocation4], 64
        %v764 = vld [vmem:[%s763] sm:$0xff]
        %v765 = vld [vmem:[%s763 + $0x8] sm:$0xff]
        %v766 = vld [vmem:[%s763 + $0x10] sm:$0xff]
        %v767 = vld [vmem:[%s763 + $0x18] sm:$0xff]
        %v769 = vsel %vm600, %v589, 0
        %v772 = vsel %vm600, %v590, 0
        %774 = vmatprep.subr.mxu0 0.0
        %775 = vmatpush1.msra.mxu0 0.0
        %776 = vmatprep.subr.mxu0 0.0
        %777 = vmatpush1.msra.mxu0 0.0
        %778 = vmatprep.subr.mxu0 0.0
        %779 = vmatpush1.msra.mxu0 0.0
        %780 = vmatprep.subr.mxu0 0.0
        %781 = vmatpush1.msra.mxu0 0.0
        %782 = vmatprep.subr.mxu0 0.0
        %783 = vmatpush1.msra.mxu0 0.0
        %784 = vmatprep.subr.mxu0 0.0
        %785 = vmatpush1.msra.mxu0 0.0
        %786 = vmatprep.subr.mxu0 0.0
        %787 = vmatpush1.msra.mxu0 0.0
        %788 = vmatprep.subr.mxu0 0.0
        %789 = vmatpush1.msra.mxu0 0.0
        %790 = vmatprep.subr.mxu0 0.0
        %791 = vmatpush1.msra.mxu0 0.0
        %792 = vmatprep.subr.mxu0 0.0
        %793 = vmatpush1.msra.mxu0 0.0
        %794 = vmatprep.subr.mxu0 0.0
        %795 = vmatpush1.msra.mxu0 0.0
        %796 = vmatprep.subr.mxu0 0.0
        %797 = vmatpush1.msra.mxu0 0.0
        %798 = vmatprep.subr.mxu0 0.0
        %799 = vmatpush1.msra.mxu0 %v767
        %800 = vmatprep.subr.mxu0 0.0
        %801 = vmatpush1.msra.mxu0 %v766
        %802 = vmatprep.subr.mxu0 0.0
        %803 = vmatpush1.msra.mxu0 %v765
        %804 = vmatprep.subr.mxu0 0.0
        %805 = vmatpush1.msra.mxu0 %v764
        %806 = vmatprep.subr.mxu0 0.0
        %807 = vmatpush2.msra.mxu0 0.0
        %808 = vmatprep.subr.mxu0 0.0
        %809 = vmatpush2.msra.mxu0 0.0
        %810 = vmatprep.subr.mxu0 0.0
        %811 = vmatpush2.msra.mxu0 0.0
        %812 = vmatprep.subr.mxu0 0.0
        %813 = vmatpush2.msra.mxu0 0.0
        %814 = vmatprep.subr.mxu0 0.0
        %815 = vmatpush2.msra.mxu0 0.0
        %816 = vmatprep.subr.mxu0 0.0
        %817 = vmatpush2.msra.mxu0 0.0
        %818 = vmatprep.subr.mxu0 0.0
        %819 = vmatpush2.msra.mxu0 0.0
        %820 = vmatprep.subr.mxu0 0.0
        %821 = vmatpush2.msra.mxu0 0.0
        %822 = vmatprep.subr.mxu0 0.0
        %823 = vmatpush2.msra.mxu0 0.0
        %824 = vmatprep.subr.mxu0 0.0
        %825 = vmatpush2.msra.mxu0 0.0
        %826 = vmatprep.subr.mxu0 0.0
        %827 = vmatpush2.msra.mxu0 0.0
        %828 = vmatprep.subr.mxu0 0.0
        %829 = vmatpush2.msra.mxu0 0.0
        %830 = vmatprep.subr.mxu0 0.0
        %831 = vmatpush2.msra.mxu0 0.0
        %832 = vmatprep.subr.mxu0 0.0
        %833 = vmatpush2.msra.mxu0 0.0
        %834 = vmatprep.subr.mxu0 0.0
        %835 = vmatpush2.msra.mxu0 0.0
        %836 = vmatprep.subr.mxu0 0.0
        %837 = vmatpush2.msra.mxu0 0.0
        %838 = vmatprep.mubr.f32.mxu0 0.0
        %839 = vmatmul.mubr.f32.gmra.mxu0 %v769
        %v840 = vpop.f32.mrf.mxu0
        %v841 = vadd.f32 0.0, %v840
        %v842 = vpop.f32.mrf.mxu0
        %843 = vmatprep.mubr.f32.mxu0 0.0
        %844 = vmatmul.mubr.f32.gmra.mxu0 %v772
        %v845 = vpop.f32.mrf.mxu0
        %v846 = vadd.f32 0.0, %v845
        %v847 = vpop.f32.mrf.mxu0
        %848 = vdwg.mxu0
        %v849 = vadd.f32 %v755, %v841
        %v850 = vadd.f32 %v760, %v846
        %v851 = vld [vmem:[%s5] sm:$0x1]
        %v853 = vlaneseq
        %v854 = vshrl.u32 %v853, 7
        %v855 = vsub.s32 0, %v854
        %v856 = vrot.slane %v851, %v855
        %v858 = vadd.f32 %v849, %v856
        %v859 = vadd.f32 %v850, %v856
        %v860 = vmax.f32 %v858, 0.0
        %v861 = vmax.f32 %v859, 0.0
        %v862 = vsel %vm293, 1, 0
        %v863 = vsel %vm294, 1, 0
        %vm864 = vcmp.eq.s32.totalorder %v862, 1
        %vm865 = vcmp.eq.s32.totalorder %v863, 1
        %v866 = vsel %vm864, %v860, 0.0
        %v867 = vsel %vm865, %v861, 0.0
        %v868 = vsel %vm600, %v866, -inf
        %v869 = vsel %vm600, %v867, -inf
        %v870 = vmax.f32 %v868, %v869
        %v871 = vrot.slane %v870, 4
        %v872 = vmax.f32 %v870, %v871
        %v873 = vrot.slane %v872, 2
        %v874 = vmax.f32 %v872, %v873
        %v875 = vrot.slane %v874, 1
        %v876 = vmax.f32 %v874, %v875
        %877 = vst.msk [vmem:[%s270] sm:$0xff] %vm600, %v860
        %878 = vst.msk [vmem:[%s270 + $0x8] sm:$0xff] %vm600, %v861
        %vm879 = vcmask 253952
        %880 = vst.msk [vmem:[%s276] sm:$0x1] %vm879, %v876
        %s881 = sand.u32 %s150, 1
        %s882 = scalar_lea.sflag [#allocation6], %s881
        %s883 = sand.u32 %s150, 1
        %s884 = smul.addr %s883, 16
        %s885 = scalar_lea.vmem [#allocation7], %s884
        %s886 = sand.u32 %s176, 1
        %s887 = scalar_lea.sflag [#allocation9], %s886
        %s888 = sand.u32 %s176, 1
        %s889 = scalar_lea.vmem [#allocation8], %s888
        // Predicated region
        $region45: #{tpu_custom_call.1} parent=39 // pred_check
          %p890 = pneg %p160
        $region46: #{tpu_custom_call.1} parent=39 // pred_check_branch
          %892 = sbr.rel (%p890) target = $region48
        $region47: #{tpu_custom_call.1} parent=39 // pred_region
          %s894 = ssub.s32 256, 256
          %895 = vsyncadd %s882, %s894
          %s896 = smul.addr %s32, 2
          %s897 = smul.addr %s896, 128
          %s898 = scalar_lea.hbm %s6, %s897
          %s899 = sshll.u32 %s885, 4
          %s900 = int_to_ptr.vmem [resolvable:$true] %s899
          %905 = dma.vmem_to_hbm [thread:$0]  %s900, 256, %s898, %s882, 128, 128, 8
        $region48: #{tpu_custom_call.1} parent=39 // pred_fallthru
          _
        // Predicated region
        $region49: #{tpu_custom_call.1} parent=39 // pred_check
          %p906 = pneg %p186
        $region50: #{tpu_custom_call.1} parent=39 // pred_check_branch
          %908 = sbr.rel (%p906) target = $region52
        $region51: #{tpu_custom_call.1} parent=39 // pred_region
          %s910 = ssub.s32 16, 16
          %911 = vsyncadd %s887, %s910
          %s912 = smul.addr %s32, 16
          %s913 = scalar_lea.hbm %s7, %s912
          %s915 = sshll.u32 %s889, 4
          %s916 = int_to_ptr.vmem [resolvable:$true] %s915
          %918 = dma.vmem_to_hbm [thread:$0]  %s916, 16, %s913, %s887
        $region52: #{tpu_custom_call.1} parent=39 // pred_fallthru
          _
      $region40: #{tpu_custom_call.1} parent=5 // pred_fallthru
        _
      %p919 = scmp.le.s32.totalorder 2, %s27
      // Predicated region
      $region53: #{tpu_custom_call.1} parent=5 // pred_check
        %p920 = pneg %p919
      $region54: #{tpu_custom_call.1} parent=5 // pred_check_branch
        %922 = sbr.rel (%p920) target = $region56
      $region55: #{tpu_custom_call.1} parent=5 // pred_region
        %s923 = ssub.s32 %s27, 2
        // Predicated region
        $region57: #{tpu_custom_call.1} parent=55 // pred_check
          %p924 = pneg %p166
        $region58: #{tpu_custom_call.1} parent=55 // pred_check_branch
          %926 = sbr.rel (%p924) target = $region60
        $region59: #{tpu_custom_call.1} parent=55 // pred_region
          %s927 = sand.u32 %s151, 1
          %s928 = scalar_lea.sflag [#allocation6], %s927
          %s929 = sand.u32 %s151, 1
          %s930 = smul.addr %s929, 16
          %s931 = scalar_lea.vmem [#allocation7], %s930
          %932 = dma.done %s928, 256
        $region60: #{tpu_custom_call.1} parent=55 // pred_fallthru
          _
        // Predicated region
        $region61: #{tpu_custom_call.1} parent=55 // pred_check
          %p933 = pneg %p192
        $region62: #{tpu_custom_call.1} parent=55 // pred_check_branch
          %935 = sbr.rel (%p933) target = $region64
        $region63: #{tpu_custom_call.1} parent=55 // pred_region
          %s936 = sand.u32 %s177, 1
          %s937 = scalar_lea.sflag [#allocation9], %s936
          %s938 = sand.u32 %s177, 1
          %s939 = scalar_lea.vmem [#allocation8], %s938
          %940 = dma.done %s937, 16
        $region64: #{tpu_custom_call.1} parent=55 // pred_fallthru
          _
      $region56: #{tpu_custom_call.1} parent=5 // pred_fallthru
        _
    $region6: #{tpu_custom_call.1} parent=1 // loop_footer
      %s31 = sadd.s32 1, %s27
    $region7: #{tpu_custom_call.1} parent=1 // loop_footer_branch
      %26 = sbr.rel target = $region3
    $region8: #{tpu_custom_call.1} parent=1 // loop_exit
      _
    %941 = vsyncpa [#allocation5], 1
    %s942 = scalar_lea.sflag [#allocation5], 1
    %943 = vsyncpa %s942, 1
    %944 = vsyncpa [#allocation6], 1
    %s945 = scalar_lea.sflag [#allocation6], 1
    %946 = vsyncpa %s945, 1
    %947 = vsyncpa [#allocation9], 1
    %s948 = scalar_lea.sflag [#allocation9], 1
    %949 = vsyncpa %s948, 1

</llo_original>
